<compile_context>
chip_gen: v6e
topology: v6e:2x2x1
jax: 0.10.0
libtpu: 0.0.40
codegen_flags: <defaults>
</compile_context>

<pallas_src>
import jax
import jax.numpy as jnp
from jax.experimental import pallas as pl
from jax.experimental.pallas import tpu as pltpu


def _round_up(x, m):
    return (x + m - 1) // m * m


def qnetwork_kernel(s_ref, a_ref, w1s_ref, w1a_ref, b1_ref, w2_ref, b2_ref,
                    w3_ref, b3_ref, out_ref):
    # ---- Layer 1: concat(state, action) @ W1 + b1, ReLU -------------------
    # concat is folded away: x @ W1 == state @ W1[:n_obs] + action @ W1[n_obs:]
    h1 = jnp.dot(s_ref[...], w1s_ref[...], preferred_element_type=jnp.float32)
    h1 = h1 + jnp.dot(a_ref[...], w1a_ref[...],
                      preferred_element_type=jnp.float32)
    h1 = jnp.maximum(h1 + b1_ref[...], 0.0)

    # ---- Layer 2: Linear(256 -> 256) + ReLU (bf16 MXU, f32 accumulation) --
    h2 = jnp.dot(h1.astype(jnp.bfloat16), w2_ref[...],
                 preferred_element_type=jnp.float32) + b2_ref[...]
    h2 = jnp.maximum(h2, 0.0)

    # ---- Head: Linear(256 -> 1) on VPU (mul + lane reduce), f32 -----------
    q = jnp.sum(h2 * w3_ref[...], axis=-1, keepdims=True) + b3_ref[0]  # (tb,1)
    # Lane-dense store: (tb, 1) column -> (1, tb) lane row (XLU transpose).
    out_ref[...] = jnp.transpose(q)


def prepare_params(params, n_obs):
    """One-time weight layout plumbing. Do NOT call per forward step."""
    return {
        "w1s": params["w1"][:n_obs].astype(jnp.float32),   # (n_obs, H)
        "w1a": params["w1"][n_obs:].astype(jnp.float32),   # (n_act, H)
        "b1":  params["b1"].astype(jnp.float32),           # (1, H)
        "w2":  params["w2"].astype(jnp.bfloat16),          # (H, H) MXU dtype
        "b2":  params["b2"].astype(jnp.float32),           # (1, H)
        "w3":  params["w3"].T.astype(jnp.float32),         # (1, H) VPU row
        "b3":  params["b3"].reshape((1,)).astype(jnp.float32),  # SMEM scalar
    }


def _pick_tile(B):
    # Small batch: one tile (block == full array everywhere).
    # Larger batch: lane-aligned tiles (multiple of 128, <= 2048 rows) with
    # >= 2 grid steps so v7x's two TensorCores both get a slice of the
    # "parallel" batch axis while per-step overhead stays amortized.
    if B <= 512:
        return max(8, _round_up(B, 8))
    return min(2048, _round_up(pl.cdiv(B, 2), 128))


def qnetwork_forward(state, action, prepared):
    """state: (B, n_obs) f32, action: (B, n_act) f32 -> (B, 1) f32."""
    B, n_obs = state.shape
    n_act = action.shape[1]
    H = prepared["w2"].shape[0]                 # hidden = 256
    n_in = n_obs + n_act

    tb = _pick_tile(B)
    num_tiles = pl.cdiv(B, tb)
    B_pad = num_tiles * tb

    const = lambda i: (0, 0)                    # weights stay VMEM-resident

    cost = pl.CostEstimate(
        flops=2 * B_pad * (n_in * H + H * H + H),
        transcendentals=0,
        bytes_accessed=(B_pad * (n_in + 1) * 4          # activations in/out
                        + n_in * H * 4 + H * H * 2      # W1 (f32) + W2 (bf16)
                        + (3 * H + 1) * 4),              # biases + w3 row
    )

    out = pl.pallas_call(
        qnetwork_kernel,
        out_shape=jax.ShapeDtypeStruct((1, B_pad), jnp.float32),
        grid=(num_tiles,),
        in_specs=[
            pl.BlockSpec((tb, n_obs), lambda i: (i, 0)),        # state tile
            pl.BlockSpec((tb, n_act), lambda i: (i, 0)),        # action tile
            pl.BlockSpec((n_obs, H), const),                    # W1[:n_obs]
            pl.BlockSpec((n_act, H), const),                    # W1[n_obs:]
            pl.BlockSpec((1, H), const),                        # b1
            pl.BlockSpec((H, H), const),                        # W2 (bf16)
            pl.BlockSpec((1, H), const),                        # b2
            pl.BlockSpec((1, H), const),                        # w3 row
            pl.BlockSpec(memory_space=pltpu.MemorySpace.SMEM),  # b3 scalar
        ],
        out_specs=pl.BlockSpec((1, tb), lambda i: (0, i)),      # lane-dense
        compiler_params=pltpu.CompilerParams(
            dimension_semantics=("parallel",),       # v7x: shard batch tiles
            vmem_limit_bytes=32 * 1024 * 1024,       # v5e default is 16 MiB
        ),
        cost_estimate=cost,
    )(state, action, prepared["w1s"], prepared["w1a"], prepared["b1"],
      prepared["w2"], prepared["b2"], prepared["w3"], prepared["b3"])

    # (1, B_pad) lane row -> (B, 1) column; rows B..B_pad were padding.
    return out[0, :B].reshape(B, 1)


def init_params(key, n_obs, n_act, hidden=256):
    """PyTorch nn.Linear-style init: W, b ~ U(-1/sqrt(fan_in), 1/sqrt(fan_in)).
    Weights stored as (in_features, out_features) so y = x @ W + b."""
    def linear(k, fan_in, fan_out):
        kw, kb = jax.random.split(k)
        bound = 1.0 / jnp.sqrt(fan_in)
        w = jax.random.uniform(kw, (fan_in, fan_out), jnp.float32, -bound, bound)
        b = jax.random.uniform(kb, (1, fan_out), jnp.float32, -bound, bound)
        return w, b

    k1, k2, k3 = jax.random.split(key, 3)
    w1, b1 = linear(k1, n_obs + n_act, hidden)   # Linear(n_obs+n_act, 256)
    w2, b2 = linear(k2, hidden, hidden)          # Linear(256, 256)
    w3, b3 = linear(k3, hidden, 1)               # Linear(256, 1)
    return {"w1": w1, "b1": b1, "w2": w2, "b2": b2, "w3": w3, "b3": b3}


def qnetwork_reference(state, action, params):
    """Pure-JAX f32 reference (same math as the PyTorch module)."""
    x = jnp.concatenate([state, action], axis=1)
    h1 = jnp.maximum(x @ params["w1"] + params["b1"], 0.0)
    h2 = jnp.maximum(h1 @ params["w2"] + params["b2"], 0.0)
    return h2 @ params["w3"] + params["b3"]


if __name__ == "__main__":
    key = jax.random.PRNGKey(0)
    k_param, k_state, k_action = jax.random.split(key, 3)

    B, n_obs, n_act = 8, 8, 4
    params = init_params(k_param, n_obs, n_act)
    prepared = prepare_params(params, n_obs)     # one-time weight prep

    state = jax.random.normal(k_state, (B, n_obs), jnp.float32)
    action = jax.random.normal(k_action, (B, n_act), jnp.float32)

    fwd = jax.jit(qnetwork_forward)
    out = jax.block_until_ready(fwd(state, action, prepared))

    ref = qnetwork_reference(state, action, params)
    assert out.shape == (B, 1)
    # Layer-2 uses bf16 MXU inputs with f32 accumulation -> loosened tolerance.
    assert jnp.allclose(out, ref, atol=5e-2, rtol=5e-2), "mismatch vs reference"

    print("KERNEL_OK")
</pallas_src>

<mosaic_0001>
module attributes {stable_mosaic.version = 11 : i64} {
  func.func @qnetwork_kernel(%arg0: i32, %arg1: memref<8x8xf32, #tpu.memory_space<vmem>>, %arg2: memref<8x4xf32, #tpu.memory_space<vmem>>, %arg3: memref<8x256xf32, #tpu.memory_space<vmem>>, %arg4: memref<4x256xf32, #tpu.memory_space<vmem>>, %arg5: memref<1x256xf32, #tpu.memory_space<vmem>>, %arg6: memref<256x256xbf16, #tpu.memory_space<vmem>>, %arg7: memref<1x256xf32, #tpu.memory_space<vmem>>, %arg8: memref<1x256xf32, #tpu.memory_space<vmem>>, %arg9: memref<1xf32, #tpu.memory_space<smem>>, %arg10: memref<1x8xf32, #tpu.memory_space<vmem>>) attributes {dimension_semantics = [#tpu.dimension_semantics<parallel>], iteration_bounds = array<i64: 1>, scalar_prefetch = 0 : i64, scratch_operands = 0 : i64, tpu.core_type = #tpu.core_type<tc>, window_params = [{transform_indices = @transform_0, window_bounds = array<i64: 8, 8>}, {transform_indices = @transform_1, window_bounds = array<i64: 8, 4>}, {pipeline_mode = #tpu.pipeline_mode<synchronous>, transform_indices = @transform_2, window_bounds = array<i64: 8, 256>}, {pipeline_mode = #tpu.pipeline_mode<synchronous>, transform_indices = @transform_3, window_bounds = array<i64: 4, 256>}, {pipeline_mode = #tpu.pipeline_mode<synchronous>, transform_indices = @transform_4, window_bounds = array<i64: 1, 256>}, {pipeline_mode = #tpu.pipeline_mode<synchronous>, transform_indices = @transform_5, window_bounds = array<i64: 256, 256>}, {pipeline_mode = #tpu.pipeline_mode<synchronous>, transform_indices = @transform_6, window_bounds = array<i64: 1, 256>}, {pipeline_mode = #tpu.pipeline_mode<synchronous>, transform_indices = @transform_7, window_bounds = array<i64: 1, 256>}, {transform_indices = @transform_8, window_bounds = array<i64: 1>}, {transform_indices = @transform_9, window_bounds = array<i64: 1, 8>}]} {
    %c0 = arith.constant 0 : index
    %c0_0 = arith.constant 0 : index
    %0 = vector.load %arg1[%c0, %c0_0] : memref<8x8xf32, #tpu.memory_space<vmem>>, vector<8x8xf32>
    %c0_1 = arith.constant 0 : index
    %c0_2 = arith.constant 0 : index
    %1 = vector.load %arg3[%c0_1, %c0_2] : memref<8x256xf32, #tpu.memory_space<vmem>>, vector<8x256xf32>
    %cst = arith.constant dense<0.000000e+00> : vector<8x256xf32>
    %2 = tpu.matmul %0, %1, %cst {dimension_numbers = #tpu.dot_dimension_numbers<[1], [0], [0], [1], [0, 0, 1, 1], [], []>} : vector<8x8xf32>, vector<8x256xf32>, vector<8x256xf32> -> vector<8x256xf32>
    %c0_3 = arith.constant 0 : index
    %c0_4 = arith.constant 0 : index
    %3 = vector.load %arg2[%c0_3, %c0_4] : memref<8x4xf32, #tpu.memory_space<vmem>>, vector<8x4xf32>
    %c0_5 = arith.constant 0 : index
    %c0_6 = arith.constant 0 : index
    %4 = vector.load %arg4[%c0_5, %c0_6] : memref<4x256xf32, #tpu.memory_space<vmem>>, vector<4x256xf32>
    %cst_7 = arith.constant dense<0.000000e+00> : vector<8x256xf32>
    %5 = tpu.matmul %3, %4, %cst_7 {dimension_numbers = #tpu.dot_dimension_numbers<[1], [0], [0], [1], [0, 0, 1, 1], [], []>} : vector<8x4xf32>, vector<4x256xf32>, vector<8x256xf32> -> vector<8x256xf32>
    %6 = arith.addf %2, %5 : vector<8x256xf32>
    %c0_8 = arith.constant 0 : index
    %c0_9 = arith.constant 0 : index
    %7 = vector.load %arg5[%c0_8, %c0_9] : memref<1x256xf32, #tpu.memory_space<vmem>>, vector<1x256xf32>
    %8 = vector.broadcast %7 : vector<1x256xf32> to vector<8x256xf32>
    %9 = arith.addf %6, %8 : vector<8x256xf32>
    %cst_10 = arith.constant 0.000000e+00 : f32
    %10 = vector.broadcast %cst_10 : f32 to vector<8x256xf32>
    %11 = arith.maximumf %9, %10 : vector<8x256xf32>
    %12 = arith.truncf %11 : vector<8x256xf32> to vector<8x256xbf16>
    %c0_11 = arith.constant 0 : index
    %c0_12 = arith.constant 0 : index
    %13 = vector.load %arg6[%c0_11, %c0_12] : memref<256x256xbf16, #tpu.memory_space<vmem>>, vector<256x256xbf16>
    %cst_13 = arith.constant dense<0.000000e+00> : vector<8x256xf32>
    %14 = tpu.matmul %12, %13, %cst_13 {dimension_numbers = #tpu.dot_dimension_numbers<[1], [0], [0], [1], [0, 0, 1, 1], [], []>} : vector<8x256xbf16>, vector<256x256xbf16>, vector<8x256xf32> -> vector<8x256xf32>
    %c0_14 = arith.constant 0 : index
    %c0_15 = arith.constant 0 : index
    %15 = vector.load %arg7[%c0_14, %c0_15] : memref<1x256xf32, #tpu.memory_space<vmem>>, vector<1x256xf32>
    %16 = vector.broadcast %15 : vector<1x256xf32> to vector<8x256xf32>
    %17 = arith.addf %14, %16 : vector<8x256xf32>
    %cst_16 = arith.constant 0.000000e+00 : f32
    %18 = vector.broadcast %cst_16 : f32 to vector<8x256xf32>
    %19 = arith.maximumf %17, %18 : vector<8x256xf32>
    %c0_17 = arith.constant 0 : index
    %c0_18 = arith.constant 0 : index
    %20 = vector.load %arg8[%c0_17, %c0_18] : memref<1x256xf32, #tpu.memory_space<vmem>>, vector<1x256xf32>
    %21 = vector.broadcast %20 : vector<1x256xf32> to vector<8x256xf32>
    %22 = arith.mulf %19, %21 : vector<8x256xf32>
    %cst_19 = arith.constant dense<0.000000e+00> : vector<8xf32>
    %23 = vector.multi_reduction <add>, %22, %cst_19 [1] : vector<8x256xf32> to vector<8xf32>
    %24 = vector.shape_cast %23 : vector<8xf32> to vector<8x1xf32>
    %c0_20 = arith.constant 0 : index
    %25 = memref.load %arg9[%c0_20] : memref<1xf32, #tpu.memory_space<smem>>
    %26 = vector.broadcast %25 : f32 to vector<8x1xf32>
    %27 = arith.addf %24, %26 : vector<8x1xf32>
    %28 = tpu.transpose %27, [1, 0] : vector<8x1xf32> -> vector<1x8xf32>
    %c0_21 = arith.constant 0 : index
    %c0_22 = arith.constant 0 : index
    %29 = vector.load %arg10[%c0_21, %c0_22] : memref<1x8xf32, #tpu.memory_space<vmem>>, vector<1x8xf32>
    tpu.vector_store %arg10[%c0_21, %c0_22], %28 {strides = array<i32>} : memref<1x8xf32, #tpu.memory_space<vmem>>, vector<1x8xf32>,
    return
  }
  func.func @transform_0(%arg0: i32) -> (i32, i32) {
    %c0_i32 = arith.constant 0 : i32
    %c0_i32_0 = arith.constant 0 : i32
    return %arg0, %c0_i32 : i32, i32
  }
  func.func @transform_1(%arg0: i32) -> (i32, i32) {
    %c0_i32 = arith.constant 0 : i32
    %c0_i32_0 = arith.constant 0 : i32
    return %arg0, %c0_i32 : i32, i32
  }
  func.func @transform_2(%arg0: i32) -> (i32, i32) {
    %c0_i32 = arith.constant 0 : i32
    %c0_i32_0 = arith.constant 0 : i32
    %c0_i32_1 = arith.constant 0 : i32
    return %c0_i32, %c0_i32_0 : i32, i32
  }
  func.func @transform_3(%arg0: i32) -> (i32, i32) {
    %c0_i32 = arith.constant 0 : i32
    %c0_i32_0 = arith.constant 0 : i32
    %c0_i32_1 = arith.constant 0 : i32
    return %c0_i32, %c0_i32_0 : i32, i32
  }
  func.func @transform_4(%arg0: i32) -> (i32, i32) {
    %c0_i32 = arith.constant 0 : i32
    %c0_i32_0 = arith.constant 0 : i32
    %c0_i32_1 = arith.constant 0 : i32
    return %c0_i32, %c0_i32_0 : i32, i32
  }
  func.func @transform_5(%arg0: i32) -> (i32, i32) {
    %c0_i32 = arith.constant 0 : i32
    %c0_i32_0 = arith.constant 0 : i32
    %c0_i32_1 = arith.constant 0 : i32
    return %c0_i32, %c0_i32_0 : i32, i32
  }
  func.func @transform_6(%arg0: i32) -> (i32, i32) {
    %c0_i32 = arith.constant 0 : i32
    %c0_i32_0 = arith.constant 0 : i32
    %c0_i32_1 = arith.constant 0 : i32
    return %c0_i32, %c0_i32_0 : i32, i32
  }
  func.func @transform_7(%arg0: i32) -> (i32, i32) {
    %c0_i32 = arith.constant 0 : i32
    %c0_i32_0 = arith.constant 0 : i32
    %c0_i32_1 = arith.constant 0 : i32
    return %c0_i32, %c0_i32_0 : i32, i32
  }
  func.func @transform_8(%arg0: i32) -> i32 {
    %c0_i32 = arith.constant 0 : i32
    %c0_i32_0 = arith.constant 0 : i32
    return %c0_i32 : i32
  }
  func.func @transform_9(%arg0: i32) -> (i32, i32) {
    %c0_i32 = arith.constant 0 : i32
    %c0_i32_0 = arith.constant 0 : i32
    return %c0_i32, %arg0 : i32, i32
  }
}

</mosaic_0001>

<llo_original>
// kernel: qnetwork_forward.1
$region0: #{qnetwork_forward.1}
  #allocation0 [shape = 'u32[]', space=smem, size = 0x4, offset = 0x4, fixed_abs, tag = 'smem constant byte address 0x4 - core index']
  #allocation1 [shape = 'u32[144,128]{1,0:T(1,128)}', space=vmem, size = 0x12000, scoped, tag = 'internal scratch']
  #allocation2 [shape = 'f32[1]{0:T(128)S(6)}', space=smem, size = 0x200, scoped, tag = 'scoped memory for qnetwork_forward.1']
  %s0 = inlined_call_operand.hbm [shape: f32[8,8], index: 0, kind: input, shape index: {}]
  %s1 = inlined_call_operand.vmem [shape: f32[8,4], index: 1, kind: input, shape index: {}]
  %s2 = inlined_call_operand.vmem [shape: f32[8,256], index: 2, kind: input, shape index: {}]
  %s3 = inlined_call_operand.hbm [shape: f32[4,256], index: 3, kind: input, shape index: {}]
  %s4 = inlined_call_operand.vmem [shape: f32[1,256], index: 4, kind: input, shape index: {}]
  %s5 = inlined_call_operand.hbm [shape: bf16[256,256], index: 5, kind: input, shape index: {}]
  %s6 = inlined_call_operand.vmem [shape: f32[1,256], index: 6, kind: input, shape index: {}]
  %s7 = inlined_call_operand.vmem [shape: f32[1,256], index: 7, kind: input, shape index: {}]
  %s8 = inlined_call_operand.<no memory space> [shape: f32[1], index: 8, kind: input, shape index: {}]
  %s9 = inlined_call_operand.hbm [shape: f32[1,8], index: 9, kind: output, shape index: {}]
  %s10 = sld [smem:[#allocation0]]
  $region58: #{qnetwork_forward.1} parent=0
    _
  %s12 = ssub.s32 1, %s10
  %s13 = scalar_select 0, %s12, %s10
  %14 = sst [smem:[#allocation2]] %s8
  $region1: #{qnetwork_forward.1} parent=0
    #allocation3 [shape = 'u8[4096]{0}', space=vmem, size = 0x1000, scoped, tag = 'input window, operand 0, single buffered']
    #allocation4 [shape = 's32[1]{0}', space=sflag, size = 0x4, scoped, tag = 'scoped memory for qnetwork_forward.1']
    #allocation5 [shape = 's32[1]{0}', space=sflag, size = 0x4, scoped, tag = 'scoped memory for qnetwork_forward.1']
    #allocation6 [shape = 'u8[4096]{0}', space=vmem, size = 0x1000, scoped, tag = 'input window, operand 3, single buffered']
    #allocation7 [shape = 's32[1]{0}', space=sflag, size = 0x4, scoped, tag = 'scoped memory for qnetwork_forward.1']
    #allocation8 [shape = 'u8[131072]{0}', space=vmem, size = 0x20000, scoped, tag = 'input window, operand 5, single buffered']
    #allocation9 [shape = 'u8[512]{0}', space=vmem, size = 0x400, scoped, tag = 'output window, operand 0, single buffered']
    %15 = vsyncpa [#allocation4], 0
    %16 = vsyncpa [#allocation7], 0
    %17 = vsyncpa [#allocation5], 0
    // Predicated region
    $region2: #{qnetwork_forward.1} parent=1 // pred_check
      _
    $region3: #{qnetwork_forward.1} parent=1 // pred_check_branch
      %19 = sbr.rel (0) target = $region5
    $region4: #{qnetwork_forward.1} parent=1 // pred_region
      %s21 = ssub.s32 128, 128
      %22 = vsyncadd [#allocation4], %s21
      %s24 = sshll.u32 [#allocation3], 4
      %s25 = int_to_ptr.vmem [resolvable:$true] %s24
      %27 = dma.hbm_to_vmem [thread:$0]  %s0, 128, %s25, [#allocation4]
    $region5: #{qnetwork_forward.1} parent=1 // pred_fallthru
      _
    // Predicated region
    $region6: #{qnetwork_forward.1} parent=1 // pred_check
      _
    $region7: #{qnetwork_forward.1} parent=1 // pred_check_branch
      %29 = sbr.rel (0) target = $region9
    $region8: #{qnetwork_forward.1} parent=1 // pred_region
      _
    $region9: #{qnetwork_forward.1} parent=1 // pred_fallthru
      _
    // Predicated region
    $region10: #{qnetwork_forward.1} parent=1 // pred_check
      _
    $region11: #{qnetwork_forward.1} parent=1 // pred_check_branch
      %31 = sbr.rel (0) target = $region13
    $region12: #{qnetwork_forward.1} parent=1 // pred_region
      _
    $region13: #{qnetwork_forward.1} parent=1 // pred_fallthru
      _
    // Predicated region
    $region14: #{qnetwork_forward.1} parent=1 // pred_check
      _
    $region15: #{qnetwork_forward.1} parent=1 // pred_check_branch
      %33 = sbr.rel (0) target = $region17
    $region16: #{qnetwork_forward.1} parent=1 // pred_region
      %s35 = ssub.s32 128, 128
      %36 = vsyncadd [#allocation7], %s35
      %s38 = sshll.u32 [#allocation6], 4
      %s39 = int_to_ptr.vmem [resolvable:$true] %s38
      %41 = dma.hbm_to_vmem [thread:$0]  %s3, 128, %s39, [#allocation7]
    $region17: #{qnetwork_forward.1} parent=1 // pred_fallthru
      _
    // Predicated region
    $region18: #{qnetwork_forward.1} parent=1 // pred_check
      _
    $region19: #{qnetwork_forward.1} parent=1 // pred_check_branch
      %43 = sbr.rel (0) target = $region21
    $region20: #{qnetwork_forward.1} parent=1 // pred_region
      _
    $region21: #{qnetwork_forward.1} parent=1 // pred_fallthru
      _
    // Predicated region
    $region22: #{qnetwork_forward.1} parent=1 // pred_check
      _
    $region23: #{qnetwork_forward.1} parent=1 // pred_check_branch
      %45 = sbr.rel (0) target = $region25
    $region24: #{qnetwork_forward.1} parent=1 // pred_region
      %s47 = ssub.s32 4096, 4096
      %48 = vsyncadd [#allocation7], %s47
      %s49 = sshll.u32 [#allocation8], 4
      %s50 = int_to_ptr.vmem [resolvable:$true] %s49
      %55 = dma.hbm_to_vmem [thread:$0]  %s5, 4096, %s50, [#allocation7], 128, 128, 8
    $region25: #{qnetwork_forward.1} parent=1 // pred_fallthru
      _
    // Predicated region
    $region26: #{qnetwork_forward.1} parent=1 // pred_check
      _
    $region27: #{qnetwork_forward.1} parent=1 // pred_check_branch
      %57 = sbr.rel (0) target = $region29
    $region28: #{qnetwork_forward.1} parent=1 // pred_region
      _
    $region29: #{qnetwork_forward.1} parent=1 // pred_fallthru
      _
    // Predicated region
    $region30: #{qnetwork_forward.1} parent=1 // pred_check
      _
    $region31: #{qnetwork_forward.1} parent=1 // pred_check_branch
      %59 = sbr.rel (0) target = $region33
    $region32: #{qnetwork_forward.1} parent=1 // pred_region
      _
    $region33: #{qnetwork_forward.1} parent=1 // pred_fallthru
      _
    // Predicated region
    $region34: #{qnetwork_forward.1} parent=1 // pred_check
      _
    $region35: #{qnetwork_forward.1} parent=1 // pred_check_branch
      %61 = sbr.rel (0) target = $region37
    $region36: #{qnetwork_forward.1} parent=1 // pred_region
      _
    $region37: #{qnetwork_forward.1} parent=1 // pred_fallthru
      _
    // Predicated region
    $region38: #{qnetwork_forward.1} parent=1 // pred_check
      _
    $region39: #{qnetwork_forward.1} parent=1 // pred_check_branch
      %63 = sbr.rel (0) target = $region41
    $region40: #{qnetwork_forward.1} parent=1 // pred_region
      %64 = dma.done [#allocation4], 128
    $region41: #{qnetwork_forward.1} parent=1 // pred_fallthru
      _
    // Predicated region
    $region42: #{qnetwork_forward.1} parent=1 // pred_check
      _
    $region43: #{qnetwork_forward.1} parent=1 // pred_check_branch
      %66 = sbr.rel (0) target = $region45
    $region44: #{qnetwork_forward.1} parent=1 // pred_region
      %67 = dma.done [#allocation7], 128
    $region45: #{qnetwork_forward.1} parent=1 // pred_fallthru
      _
    // Predicated region
    $region46: #{qnetwork_forward.1} parent=1 // pred_check
      _
    $region47: #{qnetwork_forward.1} parent=1 // pred_check_branch
      %69 = sbr.rel (0) target = $region49
    $region48: #{qnetwork_forward.1} parent=1 // pred_region
      %70 = dma.done [#allocation7], 4096
    $region49: #{qnetwork_forward.1} parent=1 // pred_fallthru
      _
    %v71 = vld [vmem:[#allocation3] sm:$0xff]
    %v72 = vld [vmem:[%s2] sm:$0xff]
    %v73 = vld [vmem:[%s2 + $0x8] sm:$0xff]
    %v74 = vld [vmem:[%s1] sm:$0xff]
    %v75 = vld [vmem:[#allocation6] sm:$0xff]
    %v77 = vcombine.high %v75, %v75
    %vm78 = vcmask 31744
    %v80 = vsel %vm78, %v74, 0
    %vm82 = vcmask 1043456
    %v83 = vsel %vm82, %v75, 0
    %v85 = vsel %vm82, %v77, 0
    %87 = vmatprep.subr.mxu0 0.0
    %88 = vmatpush1.msra.mxu0 0.0
    %89 = vmatprep.subr.mxu0 0.0
    %90 = vmatpush1.msra.mxu0 0.0
    %91 = vmatprep.subr.mxu0 0.0
    %92 = vmatpush1.msra.mxu0 0.0
    %93 = vmatprep.subr.mxu0 0.0
    %94 = vmatpush1.msra.mxu0 0.0
    %95 = vmatprep.subr.mxu0 0.0
    %96 = vmatpush1.msra.mxu0 0.0
    %97 = vmatprep.subr.mxu0 0.0
    %98 = vmatpush1.msra.mxu0 0.0
    %99 = vmatprep.subr.mxu0 0.0
    %100 = vmatpush1.msra.mxu0 0.0
    %101 = vmatprep.subr.mxu0 0.0
    %102 = vmatpush1.msra.mxu0 0.0
    %103 = vmatprep.subr.mxu0 0.0
    %104 = vmatpush1.msra.mxu0 0.0
    %105 = vmatprep.subr.mxu0 0.0
    %106 = vmatpush1.msra.mxu0 0.0
    %107 = vmatprep.subr.mxu0 0.0
    %108 = vmatpush1.msra.mxu0 0.0
    %109 = vmatprep.subr.mxu0 0.0
    %110 = vmatpush1.msra.mxu0 0.0
    %111 = vmatprep.subr.mxu0 0.0
    %112 = vmatpush1.msra.mxu0 0.0
    %113 = vmatprep.subr.mxu0 0.0
    %114 = vmatpush1.msra.mxu0 0.0
    %115 = vmatprep.subr.mxu0 0.0
    %116 = vmatpush1.msra.mxu0 0.0
    %117 = vmatprep.subr.mxu0 %v85
    %118 = vmatpush1.msra.mxu0 %v83
    %119 = vmatprep.subr.mxu0 0.0
    %120 = vmatpush2.msra.mxu0 0.0
    %121 = vmatprep.subr.mxu0 0.0
    %122 = vmatpush2.msra.mxu0 0.0
    %123 = vmatprep.subr.mxu0 0.0
    %124 = vmatpush2.msra.mxu0 0.0
    %125 = vmatprep.subr.mxu0 0.0
    %126 = vmatpush2.msra.mxu0 0.0
    %127 = vmatprep.subr.mxu0 0.0
    %128 = vmatpush2.msra.mxu0 0.0
    %129 = vmatprep.subr.mxu0 0.0
    %130 = vmatpush2.msra.mxu0 0.0
    %131 = vmatprep.subr.mxu0 0.0
    %132 = vmatpush2.msra.mxu0 0.0
    %133 = vmatprep.subr.mxu0 0.0
    %134 = vmatpush2.msra.mxu0 0.0
    %135 = vmatprep.subr.mxu0 0.0
    %136 = vmatpush2.msra.mxu0 0.0
    %137 = vmatprep.subr.mxu0 0.0
    %138 = vmatpush2.msra.mxu0 0.0
    %139 = vmatprep.subr.mxu0 0.0
    %140 = vmatpush2.msra.mxu0 0.0
    %141 = vmatprep.subr.mxu0 0.0
    %142 = vmatpush2.msra.mxu0 0.0
    %143 = vmatprep.subr.mxu0 0.0
    %144 = vmatpush2.msra.mxu0 0.0
    %145 = vmatprep.subr.mxu0 0.0
    %146 = vmatpush2.msra.mxu0 0.0
    %147 = vmatprep.subr.mxu0 0.0
    %148 = vmatpush2.msra.mxu0 0.0
    %149 = vmatprep.subr.mxu0 0.0
    %150 = vmatpush2.msra.mxu0 0.0
    %151 = vmatprep.mubr.f32.mxu0 0.0
    %152 = vmatmul.mubr.f32.gmra.mxu0 %v80
    %v153 = vpop.f32.mrf.mxu0
    %v154 = vadd.f32 0.0, %v153
    %v155 = vpop.f32.mrf.mxu0
    %v156 = vadd.f32 0.0, %v155
    %157 = vdwg.mxu0
    %vm158 = vcmask 64512
    %v160 = vsel %vm158, %v71, 0
    %162 = vmatprep.subr.mxu0 0.0
    %163 = vmatpush1.msra.mxu0 0.0
    %164 = vmatprep.subr.mxu0 0.0
    %165 = vmatpush1.msra.mxu0 0.0
    %166 = vmatprep.subr.mxu0 0.0
    %167 = vmatpush1.msra.mxu0 0.0
    %168 = vmatprep.subr.mxu0 0.0
    %169 = vmatpush1.msra.mxu0 0.0
    %170 = vmatprep.subr.mxu0 0.0
    %171 = vmatpush1.msra.mxu0 0.0
    %172 = vmatprep.subr.mxu0 0.0
    %173 = vmatpush1.msra.mxu0 0.0
    %174 = vmatprep.subr.mxu0 0.0
    %175 = vmatpush1.msra.mxu0 0.0
    %176 = vmatprep.subr.mxu0 0.0
    %177 = vmatpush1.msra.mxu0 0.0
    %178 = vmatprep.subr.mxu0 0.0
    %179 = vmatpush1.msra.mxu0 0.0
    %180 = vmatprep.subr.mxu0 0.0
    %181 = vmatpush1.msra.mxu0 0.0
    %182 = vmatprep.subr.mxu0 0.0
    %183 = vmatpush1.msra.mxu0 0.0
    %184 = vmatprep.subr.mxu0 0.0
    %185 = vmatpush1.msra.mxu0 0.0
    %186 = vmatprep.subr.mxu0 0.0
    %187 = vmatpush1.msra.mxu0 0.0
    %188 = vmatprep.subr.mxu0 0.0
    %189 = vmatpush1.msra.mxu0 0.0
    %190 = vmatprep.subr.mxu0 0.0
    %191 = vmatpush1.msra.mxu0 0.0
    %192 = vmatprep.subr.mxu0 %v73
    %193 = vmatpush1.msra.mxu0 %v72
    %194 = vmatprep.subr.mxu0 0.0
    %195 = vmatpush2.msra.mxu0 0.0
    %196 = vmatprep.subr.mxu0 0.0
    %197 = vmatpush2.msra.mxu0 0.0
    %198 = vmatprep.subr.mxu0 0.0
    %199 = vmatpush2.msra.mxu0 0.0
    %200 = vmatprep.subr.mxu0 0.0
    %201 = vmatpush2.msra.mxu0 0.0
    %202 = vmatprep.subr.mxu0 0.0
    %203 = vmatpush2.msra.mxu0 0.0
    %204 = vmatprep.subr.mxu0 0.0
    %205 = vmatpush2.msra.mxu0 0.0
    %206 = vmatprep.subr.mxu0 0.0
    %207 = vmatpush2.msra.mxu0 0.0
    %208 = vmatprep.subr.mxu0 0.0
    %209 = vmatpush2.msra.mxu0 0.0
    %210 = vmatprep.subr.mxu0 0.0
    %211 = vmatpush2.msra.mxu0 0.0
    %212 = vmatprep.subr.mxu0 0.0
    %213 = vmatpush2.msra.mxu0 0.0
    %214 = vmatprep.subr.mxu0 0.0
    %215 = vmatpush2.msra.mxu0 0.0
    %216 = vmatprep.subr.mxu0 0.0
    %217 = vmatpush2.msra.mxu0 0.0
    %218 = vmatprep.subr.mxu0 0.0
    %219 = vmatpush2.msra.mxu0 0.0
    %220 = vmatprep.subr.mxu0 0.0
    %221 = vmatpush2.msra.mxu0 0.0
    %222 = vmatprep.subr.mxu0 0.0
    %223 = vmatpush2.msra.mxu0 0.0
    %224 = vmatprep.subr.mxu0 0.0
    %225 = vmatpush2.msra.mxu0 0.0
    %226 = vmatprep.mubr.f32.mxu0 0.0
    %227 = vmatmul.mubr.f32.gmra.mxu0 %v160
    %v228 = vpop.f32.mrf.mxu0
    %v229 = vadd.f32 %v154, %v228
    %v230 = vpop.f32.mrf.mxu0
    %v231 = vadd.f32 %v156, %v230
    %232 = vdwg.mxu0
    %v233 = vld [vmem:[%s4] sm:$0x3]
    %v235 = vlaneseq
    %v236 = vshrl.u32 %v235, 7
    %v237 = vsub.s32 0, %v236
    %v238 = vrot.slane %v233, %v237
    %v239 = vlaneseq
    %v240 = vshrl.u32 %v239, 7
    %v241 = vsub.s32 1, %v240
    %v242 = vrot.slane %v233, %v241
    %v245 = vadd.f32 %v229, %v238
    %v246 = vadd.f32 %v231, %v242
    %v247 = vmax.f32 %v245, 0.0
    %v248 = vmax.f32 %v246, 0.0
    %v249 = vpack.c.bf16 %v247, %v247
    %v250 = vpack.c.bf16 %v248, %v248
    %v251 = vld [vmem:[#allocation8] sm:$0xff]
    %v252 = vld [vmem:[#allocation8 + $0x8] sm:$0xff]
    %v253 = vld [vmem:[#allocation8 + $0x10] sm:$0xff]
    %v254 = vld [vmem:[#allocation8 + $0x18] sm:$0xff]
    %v255 = vld [vmem:[#allocation8 + $0x20] sm:$0xff]
    %v256 = vld [vmem:[#allocation8 + $0x28] sm:$0xff]
    %v257 = vld [vmem:[#allocation8 + $0x30] sm:$0xff]
    %v258 = vld [vmem:[#allocation8 + $0x38] sm:$0xff]
    %v259 = vld [vmem:[#allocation8 + $0x40] sm:$0xff]
    %v260 = vld [vmem:[#allocation8 + $0x48] sm:$0xff]
    %v261 = vld [vmem:[#allocation8 + $0x50] sm:$0xff]
    %v262 = vld [vmem:[#allocation8 + $0x58] sm:$0xff]
    %v263 = vld [vmem:[#allocation8 + $0x60] sm:$0xff]
    %v264 = vld [vmem:[#allocation8 + $0x68] sm:$0xff]
    %v265 = vld [vmem:[#allocation8 + $0x70] sm:$0xff]
    %v266 = vld [vmem:[#allocation8 + $0x78] sm:$0xff]
    %v267 = vld [vmem:[#allocation8 + $0x80] sm:$0xff]
    %v268 = vld [vmem:[#allocation8 + $0x88] sm:$0xff]
    %v269 = vld [vmem:[#allocation8 + $0x90] sm:$0xff]
    %v270 = vld [vmem:[#allocation8 + $0x98] sm:$0xff]
    %v271 = vld [vmem:[#allocation8 + $0xa0] sm:$0xff]
    %v272 = vld [vmem:[#allocation8 + $0xa8] sm:$0xff]
    %v273 = vld [vmem:[#allocation8 + $0xb0] sm:$0xff]
    %v274 = vld [vmem:[#allocation8 + $0xb8] sm:$0xff]
    %v275 = vld [vmem:[#allocation8 + $0xc0] sm:$0xff]
    %v276 = vld [vmem:[#allocation8 + $0xc8] sm:$0xff]
    %v277 = vld [vmem:[#allocation8 + $0xd0] sm:$0xff]
    %v278 = vld [vmem:[#allocation8 + $0xd8] sm:$0xff]
    %v279 = vld [vmem:[#allocation8 + $0xe0] sm:$0xff]
    %v280 = vld [vmem:[#allocation8 + $0xe8] sm:$0xff]
    %v281 = vld [vmem:[#allocation8 + $0xf0] sm:$0xff]
    %v282 = vld [vmem:[#allocation8 + $0xf8] sm:$0xff]
    %v283 = vld [vmem:[%s6] sm:$0x3]
    %v285 = vlaneseq
    %v286 = vshrl.u32 %v285, 7
    %v287 = vsub.s32 0, %v286
    %v288 = vrot.slane %v283, %v287
    %v289 = vlaneseq
    %v290 = vshrl.u32 %v289, 7
    %v291 = vsub.s32 1, %v290
    %v292 = vrot.slane %v283, %v291
    %v327 = vunpack.c.l.b16 %v251
    %v328 = vunpack.c.h.b16 %v251
    %v329 = vunpack.c.l.b16 %v252
    %v330 = vunpack.c.h.b16 %v252
    %v331 = vunpack.c.l.b16 %v253
    %v332 = vunpack.c.h.b16 %v253
    %v333 = vunpack.c.l.b16 %v254
    %v334 = vunpack.c.h.b16 %v254
    %v335 = vunpack.c.l.b16 %v255
    %v336 = vunpack.c.h.b16 %v255
    %v337 = vunpack.c.l.b16 %v256
    %v338 = vunpack.c.h.b16 %v256
    %v339 = vunpack.c.l.b16 %v257
    %v340 = vunpack.c.h.b16 %v257
    %v341 = vunpack.c.l.b16 %v258
    %v342 = vunpack.c.h.b16 %v258
    %v343 = vunpack.c.l.b16 %v259
    %v344 = vunpack.c.h.b16 %v259
    %v345 = vunpack.c.l.b16 %v260
    %v346 = vunpack.c.h.b16 %v260
    %v347 = vunpack.c.l.b16 %v261
    %v348 = vunpack.c.h.b16 %v261
    %v349 = vunpack.c.l.b16 %v262
    %v350 = vunpack.c.h.b16 %v262
    %v351 = vunpack.c.l.b16 %v263
    %v352 = vunpack.c.h.b16 %v263
    %v353 = vunpack.c.l.b16 %v264
    %v354 = vunpack.c.h.b16 %v264
    %v355 = vunpack.c.l.b16 %v265
    %v356 = vunpack.c.h.b16 %v265
    %v357 = vunpack.c.l.b16 %v266
    %v358 = vunpack.c.h.b16 %v266
    %v359 = vunpack.c.l.b16 %v267
    %v360 = vunpack.c.h.b16 %v267
    %v361 = vunpack.c.l.b16 %v268
    %v362 = vunpack.c.h.b16 %v268
    %v363 = vunpack.c.l.b16 %v269
    %v364 = vunpack.c.h.b16 %v269
    %v365 = vunpack.c.l.b16 %v270
    %v366 = vunpack.c.h.b16 %v270
    %v367 = vunpack.c.l.b16 %v271
    %v368 = vunpack.c.h.b16 %v271
    %v369 = vunpack.c.l.b16 %v272
    %v370 = vunpack.c.h.b16 %v272
    %v371 = vunpack.c.l.b16 %v273
    %v372 = vunpack.c.h.b16 %v273
    %v373 = vunpack.c.l.b16 %v274
    %v374 = vunpack.c.h.b16 %v274
    %v375 = vunpack.c.l.b16 %v275
    %v376 = vunpack.c.h.b16 %v275
    %v377 = vunpack.c.l.b16 %v276
    %v378 = vunpack.c.h.b16 %v276
    %v379 = vunpack.c.l.b16 %v277
    %v380 = vunpack.c.h.b16 %v277
    %v381 = vunpack.c.l.b16 %v278
    %v382 = vunpack.c.h.b16 %v278
    %v383 = vunpack.c.l.b16 %v279
    %v384 = vunpack.c.h.b16 %v279
    %v385 = vunpack.c.l.b16 %v280
    %v386 = vunpack.c.h.b16 %v280
    %v387 = vunpack.c.l.b16 %v281
    %v388 = vunpack.c.h.b16 %v281
    %v389 = vunpack.c.l.b16 %v282
    %v390 = vunpack.c.h.b16 %v282
    %v391 = vpack.c.b16 %v329, %v327
    %v392 = vpack.c.b16 %v330, %v328
    %v393 = vpack.c.b16 %v333, %v331
    %v394 = vpack.c.b16 %v334, %v332
    %v395 = vpack.c.b16 %v337, %v335
    %v396 = vpack.c.b16 %v338, %v336
    %v397 = vpack.c.b16 %v341, %v339
    %v398 = vpack.c.b16 %v342, %v340
    %v399 = vpack.c.b16 %v345, %v343
    %v400 = vpack.c.b16 %v346, %v344
    %v401 = vpack.c.b16 %v349, %v347
    %v402 = vpack.c.b16 %v350, %v348
    %v403 = vpack.c.b16 %v353, %v351
    %v404 = vpack.c.b16 %v354, %v352
    %v405 = vpack.c.b16 %v357, %v355
    %v406 = vpack.c.b16 %v358, %v356
    %v407 = vpack.c.b16 %v361, %v359
    %v408 = vpack.c.b16 %v362, %v360
    %v409 = vpack.c.b16 %v365, %v363
    %v410 = vpack.c.b16 %v366, %v364
    %v411 = vpack.c.b16 %v369, %v367
    %v412 = vpack.c.b16 %v370, %v368
    %v413 = vpack.c.b16 %v373, %v371
    %v414 = vpack.c.b16 %v374, %v372
    %v415 = vpack.c.b16 %v377, %v375
    %v416 = vpack.c.b16 %v378, %v376
    %v417 = vpack.c.b16 %v381, %v379
    %v418 = vpack.c.b16 %v382, %v380
    %v419 = vpack.c.b16 %v385, %v383
    %v420 = vpack.c.b16 %v386, %v384
    %v421 = vpack.c.b16 %v389, %v387
    %v422 = vpack.c.b16 %v390, %v388
    %455 = vmatprep.subr.bf16.mxu0 %v406
    %456 = vmatpush1.bf16.msra.mxu0 %v405
    %457 = vmatprep.subr.bf16.mxu0 %v404
    %458 = vmatpush1.bf16.msra.mxu0 %v403
    %459 = vmatprep.subr.bf16.mxu0 %v402
    %460 = vmatpush1.bf16.msra.mxu0 %v401
    %461 = vmatprep.subr.bf16.mxu0 %v400
    %462 = vmatpush1.bf16.msra.mxu0 %v399
    %463 = vmatprep.subr.bf16.mxu0 %v398
    %464 = vmatpush1.bf16.msra.mxu0 %v397
    %465 = vmatprep.subr.bf16.mxu0 %v396
    %466 = vmatpush1.bf16.msra.mxu0 %v395
    %467 = vmatprep.subr.bf16.mxu0 %v394
    %468 = vmatpush1.bf16.msra.mxu0 %v393
    %469 = vmatprep.subr.bf16.mxu0 %v392
    %470 = vmatpush1.bf16.msra.mxu0 %v391
    %471 = vmatprep.subr.bf16.mxu0 %v422
    %472 = vmatpush2.bf16.msra.mxu0 %v421
    %473 = vmatprep.subr.bf16.mxu0 %v420
    %474 = vmatpush2.bf16.msra.mxu0 %v419
    %475 = vmatprep.subr.bf16.mxu0 %v418
    %476 = vmatpush2.bf16.msra.mxu0 %v417
    %477 = vmatprep.subr.bf16.mxu0 %v416
    %478 = vmatpush2.bf16.msra.mxu0 %v415
    %479 = vmatprep.subr.bf16.mxu0 %v414
    %480 = vmatpush2.bf16.msra.mxu0 %v413
    %481 = vmatprep.subr.bf16.mxu0 %v412
    %482 = vmatpush2.bf16.msra.mxu0 %v411
    %483 = vmatprep.subr.bf16.mxu0 %v410
    %484 = vmatpush2.bf16.msra.mxu0 %v409
    %485 = vmatprep.subr.bf16.mxu0 %v408
    %486 = vmatpush2.bf16.msra.mxu0 %v407
    %487 = vmatprep.mubr.bf16.mxu0 %v250
    %488 = vmatmul.mubr.bf16.gmra.mxu0 %v249
    %v489 = vpop.f32.mrf.mxu0
    %v490 = vadd.f32 %v288, %v489
    %v491 = vpop.f32.mrf.mxu0
    %v492 = vadd.f32 %v292, %v491
    %v493 = vpop.f32.mrf.mxu0
    %v494 = vpop.f32.mrf.mxu0
    %495 = vdwg.mxu0
    %v496 = vmax.f32 %v490, 0.0
    %v497 = vmax.f32 %v492, 0.0
    %v498 = vld [vmem:[%s7] sm:$0x3]
    %v500 = vlaneseq
    %v501 = vshrl.u32 %v500, 7
    %v502 = vsub.s32 0, %v501
    %v503 = vrot.slane %v498, %v502
    %v504 = vlaneseq
    %v505 = vshrl.u32 %v504, 7
    %v506 = vsub.s32 1, %v505
    %v507 = vrot.slane %v498, %v506
    %v510 = vmul.f32 %v496, %v503
    %v511 = vmul.f32 %v497, %v507
    %v512 = vadd.f32 %v510, %v511
    %513 = vadd.xlane.f32.xlu0 %v512
    %v514 = vpop.xlane.xlu0 %513
    %s515 = sld [smem:[#allocation2]]
    %v516 = vstv %s515
    %v517 = vadd.f32 %v514, %v516
    %518 = vxpose.xlu0.b32.start [1/16] %v517, 128
    %519 = vxpose.xlu0.b32.cont [2/16] 0.0, 128
    %520 = vxpose.xlu0.b32.cont [3/16] 0.0, 128
    %521 = vxpose.xlu0.b32.cont [4/16] 0.0, 128
    %522 = vxpose.xlu0.b32.cont [5/16] 0.0, 128
    %523 = vxpose.xlu0.b32.cont [6/16] 0.0, 128
    %524 = vxpose.xlu0.b32.cont [7/16] 0.0, 128
    %525 = vxpose.xlu0.b32.cont [8/16] 0.0, 128
    %526 = vxpose.xlu0.b32.cont [9/16] 0.0, 128
    %527 = vxpose.xlu0.b32.cont [10/16] 0.0, 128
    %528 = vxpose.xlu0.b32.cont [11/16] 0.0, 128
    %529 = vxpose.xlu0.b32.cont [12/16] 0.0, 128
    %530 = vxpose.xlu0.b32.cont [13/16] 0.0, 128
    %531 = vxpose.xlu0.b32.cont [14/16] 0.0, 128
    %532 = vxpose.xlu0.b32.cont [15/16] 0.0, 128
    %533 = vxpose.xlu0.b32.end [16/16] 0.0, 128
    %v534 = vpop.trf.xlu0
    %v535 = vpop.trf.xlu0
    %v536 = vpop.trf.xlu0
    %v537 = vpop.trf.xlu0
    %v538 = vpop.trf.xlu0
    %v539 = vpop.trf.xlu0
    %v540 = vpop.trf.xlu0
    %v541 = vpop.trf.xlu0
    %v542 = vpop.trf.xlu0
    %v543 = vpop.trf.xlu0
    %v544 = vpop.trf.xlu0
    %v545 = vpop.trf.xlu0
    %v546 = vpop.trf.xlu0
    %v547 = vpop.trf.xlu0
    %v548 = vpop.trf.xlu0
    %v549 = vpop.trf.xlu0
    %vm550 = vcmask 57344
    %551 = vst.msk [vmem:[#allocation9] sm:$0x1] %vm550, %v534
    // Predicated region
    $region50: #{qnetwork_forward.1} parent=1 // pred_check
      _
    $region51: #{qnetwork_forward.1} parent=1 // pred_check_branch
      %553 = sbr.rel (0) target = $region53
    $region52: #{qnetwork_forward.1} parent=1 // pred_region
      %s555 = ssub.s32 16, 16
      %556 = vsyncadd [#allocation5], %s555
      %s558 = sshll.u32 [#allocation9], 4
      %s559 = int_to_ptr.vmem [resolvable:$true] %s558
      %561 = dma.vmem_to_hbm [thread:$0]  %s559, 16, %s9, [#allocation5]
    $region53: #{qnetwork_forward.1} parent=1 // pred_fallthru
      _
    // Predicated region
    $region54: #{qnetwork_forward.1} parent=1 // pred_check
      _
    $region55: #{qnetwork_forward.1} parent=1 // pred_check_branch
      %563 = sbr.rel (0) target = $region57
    $region56: #{qnetwork_forward.1} parent=1 // pred_region
      %564 = dma.done [#allocation5], 16
    $region57: #{qnetwork_forward.1} parent=1 // pred_fallthru
      _
    %565 = vsyncpa [#allocation4], 1
    %566 = vsyncpa [#allocation7], 1
    %567 = vsyncpa [#allocation5], 1

</llo_original>
